<compile_context>
chip_gen: v5e
topology: v5e:2x2
jax: 0.10.0
libtpu: 0.0.40
codegen_flags: <defaults>
</compile_context>

<pallas_src>
import functools
import math

import jax
import jax.numpy as jnp
from jax.experimental import pallas as pl
from jax.experimental.pallas import tpu as pltpu


def make_pe_table(max_seq_len: int, embed_dim: int) -> jnp.ndarray:
    """Reproduce the (quirky) PyTorch double loop exactly, vectorized.

    pe[pos, i]   = sin(pos / 10000 ** (2 * i       / embed_dim))   for even i
    pe[pos, i+1] = cos(pos / 10000 ** (2 * (i + 1) / embed_dim))
    """
    pos = jnp.arange(max_seq_len, dtype=jnp.float32)[:, None]          # (L, 1)
    i_even = jnp.arange(0, embed_dim, 2, dtype=jnp.float32)            # (D/2,)
    div_sin = jnp.power(10000.0, 2.0 * i_even / embed_dim)             # (D/2,)
    div_cos = jnp.power(10000.0, 2.0 * (i_even + 1.0) / embed_dim)     # (D/2,)
    pe = jnp.zeros((max_seq_len, embed_dim), dtype=jnp.float32)
    pe = pe.at[:, 0::2].set(jnp.sin(pos / div_sin))
    pe = pe.at[:, 1::2].set(jnp.cos(pos / div_cos))
    return pe[None, :, :]                                              # (1, L, D)


def _pos_embed_kernel(x_ref, pe_ref, o_ref, *, scale):
    # Elementwise scale-and-add on the VPU. pe block broadcasts over the batch rows of
    # the x block in Path B; shapes match exactly in Path A. f32 math, cast on store.
    x = x_ref[...].astype(jnp.float32)
    p = pe_ref[...].astype(jnp.float32)
    o_ref[...] = (x * scale + p).astype(o_ref.dtype)


def _round_up(v: int, m: int) -> int:
    return ((v + m - 1) // m) * m


def _round_down(v: int, m: int) -> int:
    return (v // m) * m


_TARGET_TILE_BYTES = 2 * 1024 * 1024  # ~2 MiB/block -> >=85% of HBM roofline, VMEM-safe


def positional_embedding(x: jnp.ndarray, pe: jnp.ndarray, embed_dim: int) -> jnp.ndarray:
    """x: (B, S, D); pe: (1, max_seq_len, D) with max_seq_len >= S. Returns (B, S, D)."""
    B, S, D = x.shape
    assert D == embed_dim
    assert pe.shape[0] == 1 and pe.shape[2] == D and pe.shape[1] >= S
    L = pe.shape[1]
    scale = math.sqrt(embed_dim)
    pe = pe.astype(x.dtype)  # no-op for the f32 demo; keeps pe reads at x's width
    elem_bytes = jnp.dtype(x.dtype).itemsize
    kernel = functools.partial(_pos_embed_kernel, scale=scale)

    if D % 128 == 0:
        # ---- Path A: lane-dense D, tile the sequence dimension. ----
        target_rows = max(8, _TARGET_TILE_BYTES // (elem_bytes * D))
        ts = min(_round_up(S, 8), max(8, _round_down(min(target_rows, 2048), 8)))
        s_tiles = pl.cdiv(S, ts)
        return pl.pallas_call(
            kernel,
            out_shape=jax.ShapeDtypeStruct((B, S, D), x.dtype),
            grid_spec=pltpu.PrefetchScalarGridSpec(
                num_scalar_prefetch=0,
                # Batch innermost: pe's block index is constant across consecutive
                # steps, so its tile is DMA'd once per seq tile instead of B times.
                grid=(s_tiles, B),
                in_specs=[
                    pl.BlockSpec((1, ts, D), lambda s, b: (b, s, 0)),   # x
                    pl.BlockSpec((1, ts, D), lambda s, b: (0, s, 0)),   # full pe table
                ],
                out_specs=pl.BlockSpec((1, ts, D), lambda s, b: (b, s, 0)),
            ),
            compiler_params=pltpu.CompilerParams(
                dimension_semantics=("parallel", "parallel")),
        )(x, pe)

    # ---- Path B: D not lane-dense -> flatten to (B, S*D) so the trailing dim is dense. ----
    n = S * D
    xf = x.reshape(B, n)
    if n % 128 == 0:
        # Tile the flattened lane dim; pe is indexed directly from the full flattened
        # table (row-major order of pe[:, :S] matches x's flattened order, and any
        # padded tail of a partial block is never written back).
        tl = _TARGET_TILE_BYTES // (elem_bytes * max(B, 1))
        tl = max(128, min(n, _round_down(tl, 128)))
        pef = pe.reshape(1, L * D)
    else:
        # Fallback for odd shapes only: a block must be (8,128)-divisible or span the
        # full dim, so use one full-extent trailing block and a one-time pe row slice.
        tl = n
        pef = jax.lax.slice(pe, (0, 0, 0), (1, S, D)).reshape(1, n)
    lane_tiles = pl.cdiv(n, tl)

    out = pl.pallas_call(
        kernel,
        out_shape=jax.ShapeDtypeStruct((B, n), x.dtype),
        grid_spec=pltpu.PrefetchScalarGridSpec(
            num_scalar_prefetch=0,
            grid=(lane_tiles,),
            in_specs=[
                pl.BlockSpec((B, tl), lambda t: (0, t)),   # x (full batch in sublanes)
                pl.BlockSpec((1, tl), lambda t: (0, t)),   # pe (broadcast over batch)
            ],
            out_specs=pl.BlockSpec((B, tl), lambda t: (0, t)),
        ),
        compiler_params=pltpu.CompilerParams(
            dimension_semantics=("parallel",)),
    )(xf, pef)
    return out.reshape(B, S, D)


if __name__ == "__main__":
    key = jax.random.PRNGKey(0)
    k1, k2 = jax.random.split(key)

    # Case 1 (module's demo-sized shapes, D=32 -> Path B, lane-flattened layout).
    embed_dim = 32
    max_seq_len = 64
    batch, seq_len = 2, 8
    x = jax.random.normal(k1, (batch, seq_len, embed_dim), dtype=jnp.float32)
    pe = make_pe_table(max_seq_len, embed_dim)
    out = jax.block_until_ready(positional_embedding(x, pe, embed_dim))
    ref = x * math.sqrt(embed_dim) + pe[:, :seq_len]
    assert out.shape == (batch, seq_len, embed_dim)
    assert jnp.allclose(out, ref, atol=1e-5, rtol=1e-5)

    # Case 2 (lane-dense D=128 -> Path A, seq-tiled layout), still small.
    embed_dim2, max_seq_len2, batch2, seq_len2 = 128, 64, 2, 16
    x2 = jax.random.normal(k2, (batch2, seq_len2, embed_dim2), dtype=jnp.float32)
    pe2 = make_pe_table(max_seq_len2, embed_dim2)
    out2 = jax.block_until_ready(positional_embedding(x2, pe2, embed_dim2))
    ref2 = x2 * math.sqrt(embed_dim2) + pe2[:, :seq_len2]
    assert out2.shape == (batch2, seq_len2, embed_dim2)
    assert jnp.allclose(out2, ref2, atol=1e-5, rtol=1e-5)

    print("KERNEL_OK")
</pallas_src>

<mosaic_0001>
module attributes {stable_mosaic.version = 11 : i64} {
  func.func @_pos_embed_kernel(%arg0: i32, %arg1: memref<2x256xf32, #tpu.memory_space<vmem>>, %arg2: memref<1x256xf32, #tpu.memory_space<vmem>>, %arg3: memref<2x256xf32, #tpu.memory_space<vmem>>) attributes {dimension_semantics = [#tpu.dimension_semantics<parallel>], iteration_bounds = array<i64: 1>, scalar_prefetch = 0 : i64, scratch_operands = 0 : i64, tpu.core_type = #tpu.core_type<tc>, window_params = [{transform_indices = @transform_0, window_bounds = array<i64: 2, 256>}, {transform_indices = @transform_1, window_bounds = array<i64: 1, 256>}, {transform_indices = @transform_2, window_bounds = array<i64: 2, 256>}]} {
    %c0 = arith.constant 0 : index
    %c0_0 = arith.constant 0 : index
    %0 = vector.load %arg1[%c0, %c0_0] : memref<2x256xf32, #tpu.memory_space<vmem>>, vector<2x256xf32>
    %c0_1 = arith.constant 0 : index
    %c0_2 = arith.constant 0 : index
    %1 = vector.load %arg2[%c0_1, %c0_2] : memref<1x256xf32, #tpu.memory_space<vmem>>, vector<1x256xf32>
    %cst = arith.constant 5.65685415 : f32
    %2 = vector.broadcast %cst : f32 to vector<2x256xf32>
    %3 = arith.mulf %0, %2 : vector<2x256xf32>
    %4 = vector.broadcast %1 : vector<1x256xf32> to vector<2x256xf32>
    %5 = arith.addf %3, %4 : vector<2x256xf32>
    %c0_3 = arith.constant 0 : index
    %c0_4 = arith.constant 0 : index
    %6 = vector.load %arg3[%c0_3, %c0_4] : memref<2x256xf32, #tpu.memory_space<vmem>>, vector<2x256xf32>
    tpu.vector_store %arg3[%c0_3, %c0_4], %5 {strides = array<i32>} : memref<2x256xf32, #tpu.memory_space<vmem>>, vector<2x256xf32>,
    return
  }
  func.func @transform_0(%arg0: i32) -> (i32, i32) {
    %c0_i32 = arith.constant 0 : i32
    %c0_i32_0 = arith.constant 0 : i32
    return %c0_i32, %arg0 : i32, i32
  }
  func.func @transform_1(%arg0: i32) -> (i32, i32) {
    %c0_i32 = arith.constant 0 : i32
    %c0_i32_0 = arith.constant 0 : i32
    return %c0_i32, %arg0 : i32, i32
  }
  func.func @transform_2(%arg0: i32) -> (i32, i32) {
    %c0_i32 = arith.constant 0 : i32
    %c0_i32_0 = arith.constant 0 : i32
    return %c0_i32, %arg0 : i32, i32
  }
}

</mosaic_0001>

<llo_original>
// kernel: tpu_custom_call.1
$region0: #{tpu_custom_call.1}
  #allocation0 [shape = 'u32[]', space=smem, size = 0x4, offset = 0x4, fixed_abs, tag = 'smem constant byte address 0x4 - core index']
  #allocation1 [shape = 'u32[72,128]{1,0:T(1,128)}', space=vmem, size = 0x9000, scoped, tag = 'internal scratch']
  %s0 = inlined_call_operand.hbm [shape: f32[2,256], index: 0, kind: input, shape index: {}]
  %s1 = inlined_call_operand.hbm [shape: f32[1,2048], index: 1, kind: input, shape index: {}]
  %s2 = inlined_call_operand.hbm [shape: f32[2,256], index: 2, kind: output, shape index: {}]
  %s3 = sld [smem:[#allocation0]]
  $region26: #{tpu_custom_call.1} parent=0
    _
  %s5 = ssub.s32 1, %s3
  %s6 = scalar_select 0, %s5, %s3
  $region1: #{tpu_custom_call.1} parent=0
    #allocation2 [shape = 'u8[2048]{0}', space=vmem, size = 0x800, scoped, tag = 'input window, operand 0, single buffered']
    #allocation3 [shape = 's32[1]{0}', space=sflag, size = 0x4, scoped, tag = 'scoped memory for tpu_custom_call.1']
    #allocation4 [shape = 's32[1]{0}', space=sflag, size = 0x4, scoped, tag = 'scoped memory for tpu_custom_call.1']
    #allocation5 [shape = 'u8[1024]{0}', space=vmem, size = 0x400, scoped, tag = 'input window, operand 1, single buffered']
    #allocation6 [shape = 's32[1]{0}', space=sflag, size = 0x4, scoped, tag = 'scoped memory for tpu_custom_call.1']
    #allocation7 [shape = 'u8[2048]{0}', space=vmem, size = 0x800, scoped, tag = 'output window, operand 0, single buffered']
    %7 = vsyncpa [#allocation3], 0
    %8 = vsyncpa [#allocation6], 0
    %9 = vsyncpa [#allocation4], 0
    // Predicated region
    $region2: #{tpu_custom_call.1} parent=1 // pred_check
      _
    $region3: #{tpu_custom_call.1} parent=1 // pred_check_branch
      %11 = sbr.rel (0) target = $region5
    $region4: #{tpu_custom_call.1} parent=1 // pred_region
      %13 = vsyncadd [#allocation3], 0
      %s15 = sshll.u32 %s0, 4
      %s16 = int_to_ptr.hbm [resolvable:$true] %s15
      %s17 = sshll.u32 [#allocation2], 4
      %s18 = int_to_ptr.vmem [resolvable:$true] %s17
      %20 = dma.hbm_to_vmem [thread:$0]  %s16, 64, %s18, [#allocation3]
    $region5: #{tpu_custom_call.1} parent=1 // pred_fallthru
      _
    // Predicated region
    $region6: #{tpu_custom_call.1} parent=1 // pred_check
      _
    $region7: #{tpu_custom_call.1} parent=1 // pred_check_branch
      %22 = sbr.rel (0) target = $region9
    $region8: #{tpu_custom_call.1} parent=1 // pred_region
      %24 = vsyncadd [#allocation6], 0
      %s26 = sshll.u32 %s1, 4
      %s27 = int_to_ptr.hbm [resolvable:$true] %s26
      %s28 = sshll.u32 [#allocation5], 4
      %s29 = int_to_ptr.vmem [resolvable:$true] %s28
      %31 = dma.hbm_to_vmem [thread:$0]  %s27, 32, %s29, [#allocation6]
    $region9: #{tpu_custom_call.1} parent=1 // pred_fallthru
      _
    // Predicated region
    $region10: #{tpu_custom_call.1} parent=1 // pred_check
      _
    $region11: #{tpu_custom_call.1} parent=1 // pred_check_branch
      %33 = sbr.rel (0) target = $region13
    $region12: #{tpu_custom_call.1} parent=1 // pred_region
      %35 = dma.done [#allocation3], 64
    $region13: #{tpu_custom_call.1} parent=1 // pred_fallthru
      _
    // Predicated region
    $region14: #{tpu_custom_call.1} parent=1 // pred_check
      _
    $region15: #{tpu_custom_call.1} parent=1 // pred_check_branch
      %37 = sbr.rel (0) target = $region17
    $region16: #{tpu_custom_call.1} parent=1 // pred_region
      %39 = dma.done [#allocation6], 32
    $region17: #{tpu_custom_call.1} parent=1 // pred_fallthru
      _
    %v40 = vld [vmem:[#allocation2] sm:$0xf]
    %v41 = vld [vmem:[#allocation5] sm:$0x3]
    %v42 = vmul.f32 %v40, 5.656854
    %v44 = vperm.slane %v41, 0
    %v45 = vperm.slane %v41, 1
    %v46 = vrot.slane %v45, 6
    %vm47 = vcmask 1041408
    %v48 = vsel %vm47, %v44, %v46
    %v50 = vadd.f32 %v42, %v48
    %51 = vst [vmem:[#allocation7] sm:$0xf] %v50
    // Predicated region
    $region18: #{tpu_custom_call.1} parent=1 // pred_check
      _
    $region19: #{tpu_custom_call.1} parent=1 // pred_check_branch
      %53 = sbr.rel (0) target = $region21
    $region20: #{tpu_custom_call.1} parent=1 // pred_region
      %55 = vsyncadd [#allocation4], 0
      %s57 = sshll.u32 [#allocation7], 4
      %s58 = int_to_ptr.vmem [resolvable:$true] %s57
      %s59 = sshll.u32 %s2, 4
      %s60 = int_to_ptr.hbm [resolvable:$true] %s59
      %62 = dma.vmem_to_hbm [thread:$0]  %s58, 64, %s60, [#allocation4]
    $region21: #{tpu_custom_call.1} parent=1 // pred_fallthru
      _
    // Predicated region
    $region22: #{tpu_custom_call.1} parent=1 // pred_check
      _
    $region23: #{tpu_custom_call.1} parent=1 // pred_check_branch
      %64 = sbr.rel (0) target = $region25
    $region24: #{tpu_custom_call.1} parent=1 // pred_region
      %66 = dma.done [#allocation4], 64
    $region25: #{tpu_custom_call.1} parent=1 // pred_fallthru
      _
    %67 = vsyncpa [#allocation3], 1
    %68 = vsyncpa [#allocation6], 1
    %69 = vsyncpa [#allocation4], 1

</llo_original>
